<compile_context>
chip_gen: v7x
topology: tpu7x:2x2x1
jax: 0.10.0
libtpu: 0.0.40
codegen_flags: <defaults>
</compile_context>

<pallas_src>
import functools

import jax
import jax.numpy as jnp
from jax.experimental import pallas as pl
from jax.experimental.pallas import tpu as pltpu

_LANE = 128      # lane width (last dim)
_SUBLANE = 8     # f32 sublane group (second-to-last dim)


def _round_up(x: int, m: int) -> int:
    return ((x + m - 1) // m) * m


def _num_tensorcores() -> int:
    """Best-effort TC count: 1 on v5e/v6e, 2 on dual-TC (v7x / megacore) parts."""
    try:
        return max(1, min(2, int(getattr(jax.devices()[0], "num_cores", 1))))
    except Exception:  # pragma: no cover - defensive
        return 1


def _make_mlp_kernel(layer_in_dims, layer_out_dims, compute_dtype):
    """Fused MLP forward over one batch tile.

    layer_in_dims[i]  : contraction width used for layer i (actual in_size for
                        layer 0, 128-padded hidden width otherwise).
    layer_out_dims[i] : 128-padded output width of layer i.
    compute_dtype     : dtype of the MXU operands; accumulation is always f32.
    """
    num_layers = len(layer_in_dims)

    def kernel(x_ref, w_ref, b_ref, out_ref):
        # x_ref  : (TILE_B, in_size)                f32 (in_size need not be 128-aligned)
        # w_ref  : (L, max_in_pad, max_out_pad)     compute_dtype, packed slab
        # b_ref  : (L, 1, max_out_pad)              f32, packed slab
        # out_ref: (TILE_B, out_pad)                f32 (lane-dense, unmasked stores)
        h = x_ref[...].astype(jnp.float32)
        for i in range(num_layers):
            d_in, d_out = layer_in_dims[i], layer_out_dims[i]
            w = w_ref[i, :d_in, :d_out]          # static sub-view of resident slab
            b = b_ref[i, :, :d_out]              # (1, d_out)
            h = jnp.dot(h.astype(compute_dtype), w.astype(compute_dtype),
                        preferred_element_type=jnp.float32)
            h = h + b.astype(jnp.float32)
            if i < num_layers - 1:               # hidden_activation = ReLU
                h = jnp.maximum(h, 0.0)
        out_ref[...] = h.astype(out_ref.dtype)

    return kernel


def prepare_dqn_params(weights, biases, *, use_bf16: bool = False):
    """Pack per-layer (W, b) into two padded slabs, ONCE (hoisted out of the
    per-call path).  Rebuild only when the (target) network weights change.

    weights : list of (in_i, out_i) float32
    biases  : list of (1, out_i) or (out_i,) float32
    Returns (w_slab, b_slab, dims) where dims = (in, h1, ..., out).
    """
    num_layers = len(weights)
    assert len(biases) == num_layers
    in_size = weights[0].shape[0]
    dims = (in_size,) + tuple(w.shape[1] for w in weights)
    padded_dims = tuple(_round_up(d, _LANE) for d in dims)
    max_in = max(padded_dims[:-1])
    max_out = max(padded_dims[1:])
    w_dtype = jnp.bfloat16 if use_bf16 else jnp.float32

    w_slab = jnp.zeros((num_layers, max_in, max_out), w_dtype)
    b_slab = jnp.zeros((num_layers, 1, max_out), jnp.float32)
    for i, (w, b) in enumerate(zip(weights, biases)):
        w_slab = w_slab.at[i, :w.shape[0], :w.shape[1]].set(w.astype(w_dtype))
        b_slab = b_slab.at[i, 0, :b.shape[-1]].set(
            jnp.reshape(b, (-1,)).astype(jnp.float32))
    return w_slab, b_slab, dims


def dqn_forward(x, w_slab, b_slab, dims, *, use_bf16: bool = False,
                num_batch_tiles: int | None = None):
    """
    Fused DQN forward pass: x @ W0 + b0 -> ReLU -> ... -> W_L + b_L.

    x       : (batch, input_size) float32
    w_slab, b_slab, dims : outputs of prepare_dqn_params (dims is static).
    returns : (batch, output_size) float32
    """
    num_layers = len(dims) - 1
    batch, in_size = x.shape
    assert in_size == dims[0]
    out_size = dims[-1]
    padded_dims = tuple(_round_up(d, _LANE) for d in dims)
    max_in, max_out = int(w_slab.shape[1]), int(w_slab.shape[2])

    # One grid step on single-TC chips; two "parallel" steps on dual-TC chips.
    if num_batch_tiles is None:
        num_batch_tiles = _num_tensorcores()
    num_batch_tiles = max(1, min(num_batch_tiles, pl.cdiv(batch, _SUBLANE)))
    tb = _round_up(pl.cdiv(batch, num_batch_tiles), _SUBLANE)
    padded_batch = tb * num_batch_tiles

    # Only (tiny) batch-row padding may happen per call; feature lanes of x are
    # NOT padded — the BlockSpec last dim equals the full array width.
    if padded_batch != batch:
        x_p = jnp.zeros((padded_batch, in_size), jnp.float32)
        x_p = x_p.at[:batch].set(x.astype(jnp.float32))
    else:
        x_p = x.astype(jnp.float32)

    compute_dtype = jnp.bfloat16 if use_bf16 else jnp.float32
    layer_in_dims = (in_size,) + padded_dims[1:-1]
    layer_out_dims = padded_dims[1:]
    kernel = _make_mlp_kernel(layer_in_dims, layer_out_dims, compute_dtype)

    flops = 2 * padded_batch * sum(layer_in_dims[i] * layer_out_dims[i]
                                   for i in range(num_layers))
    bytes_accessed = (padded_batch * in_size * 4
                      + w_slab.size * w_slab.dtype.itemsize
                      + b_slab.size * 4
                      + padded_batch * padded_dims[-1] * 4)

    out_p = pl.pallas_call(
        kernel,
        out_shape=jax.ShapeDtypeStruct((padded_batch, padded_dims[-1]),
                                       jnp.float32),
        grid=(num_batch_tiles,),
        in_specs=[
            # Activations: tiled over batch, natural (unpadded) feature width.
            pl.BlockSpec((tb, in_size), lambda i: (i, 0)),
            # Parameter slabs: constant index_map -> fetched once, resident in
            # VMEM for the whole grid.
            pl.BlockSpec((num_layers, max_in, max_out), lambda i: (0, 0, 0)),
            pl.BlockSpec((num_layers, 1, max_out), lambda i: (0, 0, 0)),
        ],
        # Lane-dense (128-padded) output -> unmasked vector stores.
        out_specs=pl.BlockSpec((tb, padded_dims[-1]), lambda i: (i, 0)),
        compiler_params=pltpu.CompilerParams(
            dimension_semantics=("parallel",)),   # shard batch tiles across TCs
        cost_estimate=pl.CostEstimate(flops=flops, transcendentals=0,
                                      bytes_accessed=bytes_accessed),
    )(x_p, w_slab, b_slab)

    # Drop batch / lane padding.
    return out_p[:batch, :out_size]


def init_dqn_params(key, input_size, output_size, hidden_sizes):
    """PyTorch-nn.Linear-style init: U(-1/sqrt(fan_in), 1/sqrt(fan_in))."""
    sizes = [input_size] + list(hidden_sizes) + [output_size]
    weights, biases = [], []
    for i in range(len(sizes) - 1):
        fan_in, fan_out = sizes[i], sizes[i + 1]
        key, kw, kb = jax.random.split(key, 3)
        bound = 1.0 / (fan_in ** 0.5)
        w = jax.random.uniform(kw, (fan_in, fan_out), jnp.float32, -bound, bound)
        b = jax.random.uniform(kb, (1, fan_out), jnp.float32, -bound, bound)
        weights.append(w)
        biases.append(b)
    return weights, biases


if __name__ == "__main__":
    # CartPole sizes: state dim 4, two actions, two hidden layers of 32.
    # Batch = 256 (a replay-buffer minibatch).
    batch = 256
    input_size = 4
    output_size = 2
    hidden_sizes = [32, 32]

    key = jax.random.PRNGKey(0)
    key, kx = jax.random.split(key)
    x = jax.random.normal(kx, (batch, input_size), dtype=jnp.float32)
    weights, biases = init_dqn_params(key, input_size, output_size, hidden_sizes)

    # Pure-JAX reference (matches PyTorch nn.Linear forward).
    h = x
    for i, (w, b) in enumerate(zip(weights, biases)):
        h = h @ w + b
        if i < len(weights) - 1:
            h = jnp.maximum(h, 0.0)
    ref = jax.block_until_ready(h)

    # --- f32 path (exact numerics; use for loss/gradient parity checks). ---
    w32, b32, dims = prepare_dqn_params(weights, biases, use_bf16=False)
    fwd_f32 = jax.jit(functools.partial(dqn_forward, dims=dims, use_bf16=False))
    q_f32 = jax.block_until_ready(fwd_f32(x, w32, b32))
    assert q_f32.shape == (batch, output_size)
    assert jnp.allclose(q_f32, ref, atol=1e-5, rtol=1e-5)

    # --- bf16-MXU path (recommended on v6e/v7x for action selection). ---
    wbf, bbf, _ = prepare_dqn_params(weights, biases, use_bf16=True)
    fwd_bf16 = jax.jit(functools.partial(dqn_forward, dims=dims, use_bf16=True))
    q_bf16 = jax.block_until_ready(fwd_bf16(x, wbf, bbf))
    assert q_bf16.shape == (batch, output_size)
    assert jnp.allclose(q_bf16, ref, atol=3e-2, rtol=3e-2)

    print("KERNEL_OK")
</pallas_src>

<mosaic_0001>
module attributes {stable_mosaic.version = 11 : i64} {
  func.func @kernel(%arg0: i32, %arg1: memref<256x4xf32, #tpu.memory_space<vmem>>, %arg2: memref<3x128x128xf32, #tpu.memory_space<vmem>>, %arg3: memref<3x1x128xf32, #tpu.memory_space<vmem>>, %arg4: memref<256x128xf32, #tpu.memory_space<vmem>>) attributes {dimension_semantics = [#tpu.dimension_semantics<parallel>], iteration_bounds = array<i64: 1>, scalar_prefetch = 0 : i64, scratch_operands = 0 : i64, tpu.core_type = #tpu.core_type<tc>, window_params = [{transform_indices = @transform_0, window_bounds = array<i64: 256, 4>}, {pipeline_mode = #tpu.pipeline_mode<synchronous>, transform_indices = @transform_1, window_bounds = array<i64: 3, 128, 128>}, {pipeline_mode = #tpu.pipeline_mode<synchronous>, transform_indices = @transform_2, window_bounds = array<i64: 3, 1, 128>}, {transform_indices = @transform_3, window_bounds = array<i64: 256, 128>}]} {
    %c0 = arith.constant 0 : index
    %c0_0 = arith.constant 0 : index
    %0 = vector.load %arg1[%c0, %c0_0] : memref<256x4xf32, #tpu.memory_space<vmem>>, vector<256x4xf32>
    %c0_1 = arith.constant 0 : index
    %c0_2 = arith.constant 0 : index
    %c0_3 = arith.constant 0 : index
    %1 = vector.load %arg2[%c0_1, %c0_2, %c0_3] : memref<3x128x128xf32, #tpu.memory_space<vmem>>, vector<1x4x128xf32>
    %2 = vector.shape_cast %1 : vector<1x4x128xf32> to vector<4x128xf32>
    %c0_4 = arith.constant 0 : index
    %c0_5 = arith.constant 0 : index
    %c0_6 = arith.constant 0 : index
    %3 = vector.load %arg3[%c0_4, %c0_5, %c0_6] : memref<3x1x128xf32, #tpu.memory_space<vmem>>, vector<1x1x128xf32>
    %4 = vector.shape_cast %3 : vector<1x1x128xf32> to vector<1x128xf32>
    %cst = arith.constant dense<0.000000e+00> : vector<256x128xf32>
    %5 = tpu.matmul %0, %2, %cst {dimension_numbers = #tpu.dot_dimension_numbers<[1], [0], [0], [1], [0, 0, 1, 1], [], []>} : vector<256x4xf32>, vector<4x128xf32>, vector<256x128xf32> -> vector<256x128xf32>
    %6 = vector.broadcast %4 : vector<1x128xf32> to vector<256x128xf32>
    %7 = arith.addf %5, %6 : vector<256x128xf32>
    %cst_7 = arith.constant 0.000000e+00 : f32
    %8 = vector.broadcast %cst_7 : f32 to vector<256x128xf32>
    %9 = arith.maximumf %7, %8 : vector<256x128xf32>
    %c1 = arith.constant 1 : index
    %c0_8 = arith.constant 0 : index
    %c0_9 = arith.constant 0 : index
    %10 = vector.load %arg2[%c1, %c0_8, %c0_9] : memref<3x128x128xf32, #tpu.memory_space<vmem>>, vector<1x128x128xf32>
    %11 = vector.shape_cast %10 : vector<1x128x128xf32> to vector<128x128xf32>
    %c1_10 = arith.constant 1 : index
    %c0_11 = arith.constant 0 : index
    %c0_12 = arith.constant 0 : index
    %12 = vector.load %arg3[%c1_10, %c0_11, %c0_12] : memref<3x1x128xf32, #tpu.memory_space<vmem>>, vector<1x1x128xf32>
    %13 = vector.shape_cast %12 : vector<1x1x128xf32> to vector<1x128xf32>
    %cst_13 = arith.constant dense<0.000000e+00> : vector<256x128xf32>
    %14 = tpu.matmul %9, %11, %cst_13 {dimension_numbers = #tpu.dot_dimension_numbers<[1], [0], [0], [1], [0, 0, 1, 1], [], []>} : vector<256x128xf32>, vector<128x128xf32>, vector<256x128xf32> -> vector<256x128xf32>
    %15 = vector.broadcast %13 : vector<1x128xf32> to vector<256x128xf32>
    %16 = arith.addf %14, %15 : vector<256x128xf32>
    %cst_14 = arith.constant 0.000000e+00 : f32
    %17 = vector.broadcast %cst_14 : f32 to vector<256x128xf32>
    %18 = arith.maximumf %16, %17 : vector<256x128xf32>
    %c2 = arith.constant 2 : index
    %c0_15 = arith.constant 0 : index
    %c0_16 = arith.constant 0 : index
    %19 = vector.load %arg2[%c2, %c0_15, %c0_16] : memref<3x128x128xf32, #tpu.memory_space<vmem>>, vector<1x128x128xf32>
    %20 = vector.shape_cast %19 : vector<1x128x128xf32> to vector<128x128xf32>
    %c2_17 = arith.constant 2 : index
    %c0_18 = arith.constant 0 : index
    %c0_19 = arith.constant 0 : index
    %21 = vector.load %arg3[%c2_17, %c0_18, %c0_19] : memref<3x1x128xf32, #tpu.memory_space<vmem>>, vector<1x1x128xf32>
    %22 = vector.shape_cast %21 : vector<1x1x128xf32> to vector<1x128xf32>
    %cst_20 = arith.constant dense<0.000000e+00> : vector<256x128xf32>
    %23 = tpu.matmul %18, %20, %cst_20 {dimension_numbers = #tpu.dot_dimension_numbers<[1], [0], [0], [1], [0, 0, 1, 1], [], []>} : vector<256x128xf32>, vector<128x128xf32>, vector<256x128xf32> -> vector<256x128xf32>
    %24 = vector.broadcast %22 : vector<1x128xf32> to vector<256x128xf32>
    %25 = arith.addf %23, %24 : vector<256x128xf32>
    %c0_21 = arith.constant 0 : index
    %c0_22 = arith.constant 0 : index
    %26 = vector.load %arg4[%c0_21, %c0_22] : memref<256x128xf32, #tpu.memory_space<vmem>>, vector<256x128xf32>
    tpu.vector_store %arg4[%c0_21, %c0_22], %25 {strides = array<i32>} : memref<256x128xf32, #tpu.memory_space<vmem>>, vector<256x128xf32>,
    return
  }
  func.func @transform_0(%arg0: i32) -> (i32, i32) {
    %c0_i32 = arith.constant 0 : i32
    %c0_i32_0 = arith.constant 0 : i32
    return %arg0, %c0_i32 : i32, i32
  }
  func.func @transform_1(%arg0: i32) -> (i32, i32, i32) {
    %c0_i32 = arith.constant 0 : i32
    %c0_i32_0 = arith.constant 0 : i32
    %c0_i32_1 = arith.constant 0 : i32
    %c0_i32_2 = arith.constant 0 : i32
    return %c0_i32, %c0_i32_0, %c0_i32_1 : i32, i32, i32
  }
  func.func @transform_2(%arg0: i32) -> (i32, i32, i32) {
    %c0_i32 = arith.constant 0 : i32
    %c0_i32_0 = arith.constant 0 : i32
    %c0_i32_1 = arith.constant 0 : i32
    %c0_i32_2 = arith.constant 0 : i32
    return %c0_i32, %c0_i32_0, %c0_i32_1 : i32, i32, i32
  }
  func.func @transform_3(%arg0: i32) -> (i32, i32) {
    %c0_i32 = arith.constant 0 : i32
    %c0_i32_0 = arith.constant 0 : i32
    return %arg0, %c0_i32 : i32, i32
  }
}

</mosaic_0001>

<llo_original>
// kernel: dqn_forward.1
$region0: #{dqn_forward.1}
  #allocation0 [shape = 'u32[]', space=smem, size = 0x4, offset = 0x4, fixed_abs, tag = 'smem constant byte address 0x4 - core index']
  #allocation1 [shape = 'u32[144,128]{1,0:T(1,128)}', space=vmem, size = 0x12000, scoped, tag = 'internal scratch']
  %s0 = inlined_call_operand.vmem [shape: f32[256,4], index: 0, kind: input, shape index: {}]
  %s1 = inlined_call_operand.hbm [shape: f32[3,128,128], index: 1, kind: input, shape index: {}]
  %s2 = inlined_call_operand.vmem [shape: f32[3,1,128], index: 2, kind: input, shape index: {}]
  %s3 = inlined_call_operand.vmem [shape: f32[256,128], index: 3, kind: output, shape index: {}]
  %s4 = sld [smem:[#allocation0]]
  $region26: #{dqn_forward.1} parent=0
    _
  %s6 = ssub.s32 1, %s4
  %s7 = scalar_select 0, %s6, %s4
  $region1: #{dqn_forward.1} parent=0
    #allocation2 [shape = 'u8[196608]{0}', space=vmem, size = 0x30000, scoped, tag = 'input window, operand 1, single buffered']
    #allocation3 [shape = 's32[1]{0}', space=sflag, size = 0x4, scoped, tag = 'scoped memory for dqn_forward.1']
    %8 = vsyncpa [#allocation3], 0
    // Predicated region
    $region2: #{dqn_forward.1} parent=1 // pred_check
      _
    $region3: #{dqn_forward.1} parent=1 // pred_check_branch
      %10 = sbr.rel (0) target = $region5
    $region4: #{dqn_forward.1} parent=1 // pred_region
      _
    $region5: #{dqn_forward.1} parent=1 // pred_fallthru
      _
    // Predicated region
    $region6: #{dqn_forward.1} parent=1 // pred_check
      _
    $region7: #{dqn_forward.1} parent=1 // pred_check_branch
      %12 = sbr.rel (0) target = $region9
    $region8: #{dqn_forward.1} parent=1 // pred_region
      %s14 = ssub.s32 6144, 6144
      %15 = vsyncadd [#allocation3], %s14
      %s16 = sshll.u32 [#allocation2], 4
      %s17 = int_to_ptr.vmem [resolvable:$true] %s16
      %22 = dma.hbm_to_vmem [thread:$0]  %s1, 6144, %s17, [#allocation3], 128, 128, 8
    $region9: #{dqn_forward.1} parent=1 // pred_fallthru
      _
    // Predicated region
    $region10: #{dqn_forward.1} parent=1 // pred_check
      _
    $region11: #{dqn_forward.1} parent=1 // pred_check_branch
      %24 = sbr.rel (0) target = $region13
    $region12: #{dqn_forward.1} parent=1 // pred_region
      _
    $region13: #{dqn_forward.1} parent=1 // pred_fallthru
      _
    // Predicated region
    $region14: #{dqn_forward.1} parent=1 // pred_check
      _
    $region15: #{dqn_forward.1} parent=1 // pred_check_branch
      %26 = sbr.rel (0) target = $region17
    $region16: #{dqn_forward.1} parent=1 // pred_region
      %27 = dma.done [#allocation3], 6144
    $region17: #{dqn_forward.1} parent=1 // pred_fallthru
      _
    %v28 = vld [vmem:[%s0] sm:$0xff]
    %v29 = vld [vmem:[%s0 + $0x8] sm:$0xff]
    %v30 = vld [vmem:[%s0 + $0x10] sm:$0xff]
    %v31 = vld [vmem:[%s0 + $0x18] sm:$0xff]
    %v32 = vld [vmem:[%s0 + $0x20] sm:$0xff]
    %v33 = vld [vmem:[%s0 + $0x28] sm:$0xff]
    %v34 = vld [vmem:[%s0 + $0x30] sm:$0xff]
    %v35 = vld [vmem:[%s0 + $0x38] sm:$0xff]
    %v36 = vld [vmem:[%s0 + $0x40] sm:$0xff]
    %v37 = vld [vmem:[%s0 + $0x48] sm:$0xff]
    %v38 = vld [vmem:[%s0 + $0x50] sm:$0xff]
    %v39 = vld [vmem:[%s0 + $0x58] sm:$0xff]
    %v40 = vld [vmem:[%s0 + $0x60] sm:$0xff]
    %v41 = vld [vmem:[%s0 + $0x68] sm:$0xff]
    %v42 = vld [vmem:[%s0 + $0x70] sm:$0xff]
    %v43 = vld [vmem:[%s0 + $0x78] sm:$0xff]
    %v44 = vld [vmem:[%s0 + $0x80] sm:$0xff]
    %v45 = vld [vmem:[%s0 + $0x88] sm:$0xff]
    %v46 = vld [vmem:[%s0 + $0x90] sm:$0xff]
    %v47 = vld [vmem:[%s0 + $0x98] sm:$0xff]
    %v48 = vld [vmem:[%s0 + $0xa0] sm:$0xff]
    %v49 = vld [vmem:[%s0 + $0xa8] sm:$0xff]
    %v50 = vld [vmem:[%s0 + $0xb0] sm:$0xff]
    %v51 = vld [vmem:[%s0 + $0xb8] sm:$0xff]
    %v52 = vld [vmem:[%s0 + $0xc0] sm:$0xff]
    %v53 = vld [vmem:[%s0 + $0xc8] sm:$0xff]
    %v54 = vld [vmem:[%s0 + $0xd0] sm:$0xff]
    %v55 = vld [vmem:[%s0 + $0xd8] sm:$0xff]
    %v56 = vld [vmem:[%s0 + $0xe0] sm:$0xff]
    %v57 = vld [vmem:[%s0 + $0xe8] sm:$0xff]
    %v58 = vld [vmem:[%s0 + $0xf0] sm:$0xff]
    %v59 = vld [vmem:[%s0 + $0xf8] sm:$0xff]
    %v60 = vld [vmem:[#allocation2] sm:$0xf]
    %v61 = vld [vmem:[%s2] sm:$0x1]
    %v63 = vlaneseq
    %v64 = vshrl.u32 %v63, 7
    %v65 = vsub.s32 0, %v64
    %v66 = vrot.slane %v61, %v65
    %vm68 = vcmask 31744
    %v70 = vsel %vm68, %v28, 0
    %v73 = vsel %vm68, %v29, 0
    %v76 = vsel %vm68, %v30, 0
    %v79 = vsel %vm68, %v31, 0
    %v82 = vsel %vm68, %v32, 0
    %v85 = vsel %vm68, %v33, 0
    %v88 = vsel %vm68, %v34, 0
    %v91 = vsel %vm68, %v35, 0
    %v94 = vsel %vm68, %v36, 0
    %v97 = vsel %vm68, %v37, 0
    %v100 = vsel %vm68, %v38, 0
    %v103 = vsel %vm68, %v39, 0
    %v106 = vsel %vm68, %v40, 0
    %v109 = vsel %vm68, %v41, 0
    %v112 = vsel %vm68, %v42, 0
    %v115 = vsel %vm68, %v43, 0
    %v118 = vsel %vm68, %v44, 0
    %v121 = vsel %vm68, %v45, 0
    %v124 = vsel %vm68, %v46, 0
    %v127 = vsel %vm68, %v47, 0
    %v130 = vsel %vm68, %v48, 0
    %v133 = vsel %vm68, %v49, 0
    %v136 = vsel %vm68, %v50, 0
    %v139 = vsel %vm68, %v51, 0
    %v142 = vsel %vm68, %v52, 0
    %v145 = vsel %vm68, %v53, 0
    %v148 = vsel %vm68, %v54, 0
    %v151 = vsel %vm68, %v55, 0
    %v154 = vsel %vm68, %v56, 0
    %v157 = vsel %vm68, %v57, 0
    %v160 = vsel %vm68, %v58, 0
    %v163 = vsel %vm68, %v59, 0
    %vm165 = vcmask 1043456
    %v167 = vsel %vm165, %v60, 0
    %169 = vmatprep.subr.mxu0 0.0
    %170 = vmatpush1.msra.mxu0 %v167
    %171 = vmatprep.subr.mxu0 0.0
    %172 = vmatpush1.msra.mxu0 0.0
    %173 = vmatprep.subr.mxu0 0.0
    %174 = vmatpush1.msra.mxu0 0.0
    %175 = vmatprep.subr.mxu0 0.0
    %176 = vmatpush1.msra.mxu0 0.0
    %177 = vmatprep.subr.mxu0 0.0
    %178 = vmatpush1.msra.mxu0 0.0
    %179 = vmatprep.subr.mxu0 0.0
    %180 = vmatpush1.msra.mxu0 0.0
    %181 = vmatprep.subr.mxu0 0.0
    %182 = vmatpush1.msra.mxu0 0.0
    %183 = vmatprep.subr.mxu0 0.0
    %184 = vmatpush1.msra.mxu0 0.0
    %185 = vmatprep.subr.mxu0 0.0
    %186 = vmatpush1.msra.mxu0 0.0
    %187 = vmatprep.subr.mxu0 0.0
    %188 = vmatpush1.msra.mxu0 0.0
    %189 = vmatprep.subr.mxu0 0.0
    %190 = vmatpush1.msra.mxu0 0.0
    %191 = vmatprep.subr.mxu0 0.0
    %192 = vmatpush1.msra.mxu0 0.0
    %193 = vmatprep.subr.mxu0 0.0
    %194 = vmatpush1.msra.mxu0 0.0
    %195 = vmatprep.subr.mxu0 0.0
    %196 = vmatpush1.msra.mxu0 0.0
    %197 = vmatprep.subr.mxu0 0.0
    %198 = vmatpush1.msra.mxu0 0.0
    %199 = vmatprep.subr.mxu0 0.0
    %200 = vmatpush1.msra.mxu0 0.0
    %201 = vmatprep.subr.mxu0 0.0
    %202 = vmatpush1.msra.mxu0 0.0
    %203 = vmatprep.subr.mxu0 0.0
    %204 = vmatpush1.msra.mxu0 0.0
    %205 = vmatprep.subr.mxu0 0.0
    %206 = vmatpush1.msra.mxu0 0.0
    %207 = vmatprep.subr.mxu0 0.0
    %208 = vmatpush1.msra.mxu0 0.0
    %209 = vmatprep.subr.mxu0 0.0
    %210 = vmatpush1.msra.mxu0 0.0
    %211 = vmatprep.subr.mxu0 0.0
    %212 = vmatpush1.msra.mxu0 0.0
    %213 = vmatprep.subr.mxu0 0.0
    %214 = vmatpush1.msra.mxu0 0.0
    %215 = vmatprep.subr.mxu0 0.0
    %216 = vmatpush1.msra.mxu0 0.0
    %217 = vmatprep.subr.mxu0 0.0
    %218 = vmatpush1.msra.mxu0 0.0
    %219 = vmatprep.subr.mxu0 0.0
    %220 = vmatpush1.msra.mxu0 0.0
    %221 = vmatprep.subr.mxu0 0.0
    %222 = vmatpush1.msra.mxu0 0.0
    %223 = vmatprep.subr.mxu0 0.0
    %224 = vmatpush1.msra.mxu0 0.0
    %225 = vmatprep.subr.mxu0 0.0
    %226 = vmatpush1.msra.mxu0 0.0
    %227 = vmatprep.subr.mxu0 0.0
    %228 = vmatpush1.msra.mxu0 0.0
    %229 = vmatprep.subr.mxu0 0.0
    %230 = vmatpush1.msra.mxu0 0.0
    %231 = vmatprep.subr.mxu0 0.0
    %232 = vmatpush1.msra.mxu0 0.0
    %233 = vmatprep.mubr.f32.mxu0 0.0
    %234 = vmatmul.mubr.f32.gmra.mrb[0].mxu0 %v70
    %v235 = vpop.f32.mrb[0].mxu0
    %v236 = vadd.f32 %v66, %v235
    %v237 = vpop.f32.mrb[0].mxu0
    %238 = vmatprep.mubr.f32.mxu0 0.0
    %239 = vmatmul.mubr.f32.gmra.mrb[0].mxu0 %v73
    %v240 = vpop.f32.mrb[0].mxu0
    %v241 = vadd.f32 %v66, %v240
    %v242 = vpop.f32.mrb[0].mxu0
    %243 = vmatprep.mubr.f32.mxu0 0.0
    %244 = vmatmul.mubr.f32.gmra.mrb[0].mxu0 %v76
    %v245 = vpop.f32.mrb[0].mxu0
    %v246 = vadd.f32 %v66, %v245
    %v247 = vpop.f32.mrb[0].mxu0
    %248 = vmatprep.mubr.f32.mxu0 0.0
    %249 = vmatmul.mubr.f32.gmra.mrb[0].mxu0 %v79
    %v250 = vpop.f32.mrb[0].mxu0
    %v251 = vadd.f32 %v66, %v250
    %v252 = vpop.f32.mrb[0].mxu0
    %253 = vmatprep.mubr.f32.mxu0 0.0
    %254 = vmatmul.mubr.f32.gmra.mrb[0].mxu0 %v82
    %v255 = vpop.f32.mrb[0].mxu0
    %v256 = vadd.f32 %v66, %v255
    %v257 = vpop.f32.mrb[0].mxu0
    %258 = vmatprep.mubr.f32.mxu0 0.0
    %259 = vmatmul.mubr.f32.gmra.mrb[0].mxu0 %v85
    %v260 = vpop.f32.mrb[0].mxu0
    %v261 = vadd.f32 %v66, %v260
    %v262 = vpop.f32.mrb[0].mxu0
    %263 = vmatprep.mubr.f32.mxu0 0.0
    %264 = vmatmul.mubr.f32.gmra.mrb[0].mxu0 %v88
    %v265 = vpop.f32.mrb[0].mxu0
    %v266 = vadd.f32 %v66, %v265
    %v267 = vpop.f32.mrb[0].mxu0
    %268 = vmatprep.mubr.f32.mxu0 0.0
    %269 = vmatmul.mubr.f32.gmra.mrb[0].mxu0 %v91
    %v270 = vpop.f32.mrb[0].mxu0
    %v271 = vadd.f32 %v66, %v270
    %v272 = vpop.f32.mrb[0].mxu0
    %273 = vmatprep.mubr.f32.mxu0 0.0
    %274 = vmatmul.mubr.f32.gmra.mrb[0].mxu0 %v94
    %v275 = vpop.f32.mrb[0].mxu0
    %v276 = vadd.f32 %v66, %v275
    %v277 = vpop.f32.mrb[0].mxu0
    %278 = vmatprep.mubr.f32.mxu0 0.0
    %279 = vmatmul.mubr.f32.gmra.mrb[0].mxu0 %v97
    %v280 = vpop.f32.mrb[0].mxu0
    %v281 = vadd.f32 %v66, %v280
    %v282 = vpop.f32.mrb[0].mxu0
    %283 = vmatprep.mubr.f32.mxu0 0.0
    %284 = vmatmul.mubr.f32.gmra.mrb[0].mxu0 %v100
    %v285 = vpop.f32.mrb[0].mxu0
    %v286 = vadd.f32 %v66, %v285
    %v287 = vpop.f32.mrb[0].mxu0
    %288 = vmatprep.mubr.f32.mxu0 0.0
    %289 = vmatmul.mubr.f32.gmra.mrb[0].mxu0 %v103
    %v290 = vpop.f32.mrb[0].mxu0
    %v291 = vadd.f32 %v66, %v290
    %v292 = vpop.f32.mrb[0].mxu0
    %293 = vmatprep.mubr.f32.mxu0 0.0
    %294 = vmatmul.mubr.f32.gmra.mrb[0].mxu0 %v106
    %v295 = vpop.f32.mrb[0].mxu0
    %v296 = vadd.f32 %v66, %v295
    %v297 = vpop.f32.mrb[0].mxu0
    %298 = vmatprep.mubr.f32.mxu0 0.0
    %299 = vmatmul.mubr.f32.gmra.mrb[0].mxu0 %v109
    %v300 = vpop.f32.mrb[0].mxu0
    %v301 = vadd.f32 %v66, %v300
    %v302 = vpop.f32.mrb[0].mxu0
    %303 = vmatprep.mubr.f32.mxu0 0.0
    %304 = vmatmul.mubr.f32.gmra.mrb[0].mxu0 %v112
    %v305 = vpop.f32.mrb[0].mxu0
    %v306 = vadd.f32 %v66, %v305
    %v307 = vpop.f32.mrb[0].mxu0
    %308 = vmatprep.mubr.f32.mxu0 0.0
    %309 = vmatmul.mubr.f32.gmra.mrb[0].mxu0 %v115
    %v310 = vpop.f32.mrb[0].mxu0
    %v311 = vadd.f32 %v66, %v310
    %v312 = vpop.f32.mrb[0].mxu0
    %313 = vmatprep.mubr.f32.mxu0 0.0
    %314 = vmatmul.mubr.f32.gmra.mrb[0].mxu0 %v118
    %v315 = vpop.f32.mrb[0].mxu0
    %v316 = vadd.f32 %v66, %v315
    %v317 = vpop.f32.mrb[0].mxu0
    %318 = vmatprep.mubr.f32.mxu0 0.0
    %319 = vmatmul.mubr.f32.gmra.mrb[0].mxu0 %v121
    %v320 = vpop.f32.mrb[0].mxu0
    %v321 = vadd.f32 %v66, %v320
    %v322 = vpop.f32.mrb[0].mxu0
    %323 = vmatprep.mubr.f32.mxu0 0.0
    %324 = vmatmul.mubr.f32.gmra.mrb[0].mxu0 %v124
    %v325 = vpop.f32.mrb[0].mxu0
    %v326 = vadd.f32 %v66, %v325
    %v327 = vpop.f32.mrb[0].mxu0
    %328 = vmatprep.mubr.f32.mxu0 0.0
    %329 = vmatmul.mubr.f32.gmra.mrb[0].mxu0 %v127
    %v330 = vpop.f32.mrb[0].mxu0
    %v331 = vadd.f32 %v66, %v330
    %v332 = vpop.f32.mrb[0].mxu0
    %333 = vmatprep.mubr.f32.mxu0 0.0
    %334 = vmatmul.mubr.f32.gmra.mrb[0].mxu0 %v130
    %v335 = vpop.f32.mrb[0].mxu0
    %v336 = vadd.f32 %v66, %v335
    %v337 = vpop.f32.mrb[0].mxu0
    %338 = vmatprep.mubr.f32.mxu0 0.0
    %339 = vmatmul.mubr.f32.gmra.mrb[0].mxu0 %v133
    %v340 = vpop.f32.mrb[0].mxu0
    %v341 = vadd.f32 %v66, %v340
    %v342 = vpop.f32.mrb[0].mxu0
    %343 = vmatprep.mubr.f32.mxu0 0.0
    %344 = vmatmul.mubr.f32.gmra.mrb[0].mxu0 %v136
    %v345 = vpop.f32.mrb[0].mxu0
    %v346 = vadd.f32 %v66, %v345
    %v347 = vpop.f32.mrb[0].mxu0
    %348 = vmatprep.mubr.f32.mxu0 0.0
    %349 = vmatmul.mubr.f32.gmra.mrb[0].mxu0 %v139
    %v350 = vpop.f32.mrb[0].mxu0
    %v351 = vadd.f32 %v66, %v350
    %v352 = vpop.f32.mrb[0].mxu0
    %353 = vmatprep.mubr.f32.mxu0 0.0
    %354 = vmatmul.mubr.f32.gmra.mrb[0].mxu0 %v142
    %v355 = vpop.f32.mrb[0].mxu0
    %v356 = vadd.f32 %v66, %v355
    %v357 = vpop.f32.mrb[0].mxu0
    %358 = vmatprep.mubr.f32.mxu0 0.0
    %359 = vmatmul.mubr.f32.gmra.mrb[0].mxu0 %v145
    %v360 = vpop.f32.mrb[0].mxu0
    %v361 = vadd.f32 %v66, %v360
    %v362 = vpop.f32.mrb[0].mxu0
    %363 = vmatprep.mubr.f32.mxu0 0.0
    %364 = vmatmul.mubr.f32.gmra.mrb[0].mxu0 %v148
    %v365 = vpop.f32.mrb[0].mxu0
    %v366 = vadd.f32 %v66, %v365
    %v367 = vpop.f32.mrb[0].mxu0
    %368 = vmatprep.mubr.f32.mxu0 0.0
    %369 = vmatmul.mubr.f32.gmra.mrb[0].mxu0 %v151
    %v370 = vpop.f32.mrb[0].mxu0
    %v371 = vadd.f32 %v66, %v370
    %v372 = vpop.f32.mrb[0].mxu0
    %373 = vmatprep.mubr.f32.mxu0 0.0
    %374 = vmatmul.mubr.f32.gmra.mrb[0].mxu0 %v154
    %v375 = vpop.f32.mrb[0].mxu0
    %v376 = vadd.f32 %v66, %v375
    %v377 = vpop.f32.mrb[0].mxu0
    %378 = vmatprep.mubr.f32.mxu0 0.0
    %379 = vmatmul.mubr.f32.gmra.mrb[0].mxu0 %v157
    %v380 = vpop.f32.mrb[0].mxu0
    %v381 = vadd.f32 %v66, %v380
    %v382 = vpop.f32.mrb[0].mxu0
    %383 = vmatprep.mubr.f32.mxu0 0.0
    %384 = vmatmul.mubr.f32.gmra.mrb[0].mxu0 %v160
    %v385 = vpop.f32.mrb[0].mxu0
    %v386 = vadd.f32 %v66, %v385
    %v387 = vpop.f32.mrb[0].mxu0
    %388 = vmatprep.mubr.f32.mxu0 0.0
    %389 = vmatmul.mubr.f32.gmra.mrb[0].mxu0 %v163
    %v390 = vpop.f32.mrb[0].mxu0
    %v391 = vadd.f32 %v66, %v390
    %v392 = vpop.f32.mrb[0].mxu0
    %393 = vdwg.mxu0
    %v394 = vmax.f32 %v236, 0.0
    %v395 = vmax.f32 %v241, 0.0
    %v396 = vmax.f32 %v246, 0.0
    %v397 = vmax.f32 %v251, 0.0
    %v398 = vmax.f32 %v256, 0.0
    %v399 = vmax.f32 %v261, 0.0
    %v400 = vmax.f32 %v266, 0.0
    %v401 = vmax.f32 %v271, 0.0
    %v402 = vmax.f32 %v276, 0.0
    %v403 = vmax.f32 %v281, 0.0
    %v404 = vmax.f32 %v286, 0.0
    %v405 = vmax.f32 %v291, 0.0
    %v406 = vmax.f32 %v296, 0.0
    %v407 = vmax.f32 %v301, 0.0
    %v408 = vmax.f32 %v306, 0.0
    %v409 = vmax.f32 %v311, 0.0
    %v410 = vmax.f32 %v316, 0.0
    %v411 = vmax.f32 %v321, 0.0
    %v412 = vmax.f32 %v326, 0.0
    %v413 = vmax.f32 %v331, 0.0
    %v414 = vmax.f32 %v336, 0.0
    %v415 = vmax.f32 %v341, 0.0
    %v416 = vmax.f32 %v346, 0.0
    %v417 = vmax.f32 %v351, 0.0
    %v418 = vmax.f32 %v356, 0.0
    %v419 = vmax.f32 %v361, 0.0
    %v420 = vmax.f32 %v366, 0.0
    %v421 = vmax.f32 %v371, 0.0
    %v422 = vmax.f32 %v376, 0.0
    %v423 = vmax.f32 %v381, 0.0
    %v424 = vmax.f32 %v386, 0.0
    %v425 = vmax.f32 %v391, 0.0
    %s426 = scalar_lea.vmem [#allocation2], 128
    %v427 = vld [vmem:[%s426] sm:$0xff]
    %v428 = vld [vmem:[%s426 + $0x8] sm:$0xff]
    %v429 = vld [vmem:[%s426 + $0x10] sm:$0xff]
    %v430 = vld [vmem:[%s426 + $0x18] sm:$0xff]
    %v431 = vld [vmem:[%s426 + $0x20] sm:$0xff]
    %v432 = vld [vmem:[%s426 + $0x28] sm:$0xff]
    %v433 = vld [vmem:[%s426 + $0x30] sm:$0xff]
    %v434 = vld [vmem:[%s426 + $0x38] sm:$0xff]
    %v435 = vld [vmem:[%s426 + $0x40] sm:$0xff]
    %v436 = vld [vmem:[%s426 + $0x48] sm:$0xff]
    %v437 = vld [vmem:[%s426 + $0x50] sm:$0xff]
    %v438 = vld [vmem:[%s426 + $0x58] sm:$0xff]
    %v439 = vld [vmem:[%s426 + $0x60] sm:$0xff]
    %v440 = vld [vmem:[%s426 + $0x68] sm:$0xff]
    %v441 = vld [vmem:[%s426 + $0x70] sm:$0xff]
    %v442 = vld [vmem:[%s426 + $0x78] sm:$0xff]
    %s443 = scalar_lea.vmem %s2, 1
    %v444 = vld [vmem:[%s443] sm:$0x1]
    %v446 = vlaneseq
    %v447 = vshrl.u32 %v446, 7
    %v448 = vsub.s32 0, %v447
    %v449 = vrot.slane %v444, %v448
    %451 = vmatprep.subr.mxu0 0.0
    %452 = vmatpush1.msra.mxu0 %v427
    %453 = vmatprep.subr.mxu0 0.0
    %454 = vmatpush1.msra.mxu0 %v428
    %455 = vmatprep.subr.mxu0 0.0
    %456 = vmatpush1.msra.mxu0 %v429
    %457 = vmatprep.subr.mxu0 0.0
    %458 = vmatpush1.msra.mxu0 %v430
    %459 = vmatprep.subr.mxu0 0.0
    %460 = vmatpush1.msra.mxu0 %v431
    %461 = vmatprep.subr.mxu0 0.0
    %462 = vmatpush1.msra.mxu0 %v432
    %463 = vmatprep.subr.mxu0 0.0
    %464 = vmatpush1.msra.mxu0 %v433
    %465 = vmatprep.subr.mxu0 0.0
    %466 = vmatpush1.msra.mxu0 %v434
    %467 = vmatprep.subr.mxu0 0.0
    %468 = vmatpush1.msra.mxu0 %v435
    %469 = vmatprep.subr.mxu0 0.0
    %470 = vmatpush1.msra.mxu0 %v436
    %471 = vmatprep.subr.mxu0 0.0
    %472 = vmatpush1.msra.mxu0 %v437
    %473 = vmatprep.subr.mxu0 0.0
    %474 = vmatpush1.msra.mxu0 %v438
    %475 = vmatprep.subr.mxu0 0.0
    %476 = vmatpush1.msra.mxu0 %v439
    %477 = vmatprep.subr.mxu0 0.0
    %478 = vmatpush1.msra.mxu0 %v440
    %479 = vmatprep.subr.mxu0 0.0
    %480 = vmatpush1.msra.mxu0 %v441
    %481 = vmatprep.subr.mxu0 0.0
    %482 = vmatpush1.msra.mxu0 %v442
    %483 = vmatprep.subr.mxu0 0.0
    %484 = vmatpush1.msra.mxu0 0.0
    %485 = vmatprep.subr.mxu0 0.0
    %486 = vmatpush1.msra.mxu0 0.0
    %487 = vmatprep.subr.mxu0 0.0
    %488 = vmatpush1.msra.mxu0 0.0
    %489 = vmatprep.subr.mxu0 0.0
    %490 = vmatpush1.msra.mxu0 0.0
    %491 = vmatprep.subr.mxu0 0.0
    %492 = vmatpush1.msra.mxu0 0.0
    %493 = vmatprep.subr.mxu0 0.0
    %494 = vmatpush1.msra.mxu0 0.0
    %495 = vmatprep.subr.mxu0 0.0
    %496 = vmatpush1.msra.mxu0 0.0
    %497 = vmatprep.subr.mxu0 0.0
    %498 = vmatpush1.msra.mxu0 0.0
    %499 = vmatprep.subr.mxu0 0.0
    %500 = vmatpush1.msra.mxu0 0.0
    %501 = vmatprep.subr.mxu0 0.0
    %502 = vmatpush1.msra.mxu0 0.0
    %503 = vmatprep.subr.mxu0 0.0
    %504 = vmatpush1.msra.mxu0 0.0
    %505 = vmatprep.subr.mxu0 0.0
    %506 = vmatpush1.msra.mxu0 0.0
    %507 = vmatprep.subr.mxu0 0.0
    %508 = vmatpush1.msra.mxu0 0.0
    %509 = vmatprep.subr.mxu0 0.0
    %510 = vmatpush1.msra.mxu0 0.0
    %511 = vmatprep.subr.mxu0 0.0
    %512 = vmatpush1.msra.mxu0 0.0
    %513 = vmatprep.subr.mxu0 0.0
    %514 = vmatpush1.msra.mxu0 0.0
    %515 = vmatprep.mubr.f32.mxu0 0.0
    %516 = vmatmul.mubr.f32.gmra.mrb[0].mxu0 %v394
    %v517 = vpop.f32.mrb[0].mxu0
    %v518 = vadd.f32 %v449, %v517
    %v519 = vpop.f32.mrb[0].mxu0
    %520 = vmatprep.mubr.f32.mxu0 0.0
    %521 = vmatmul.mubr.f32.gmra.mrb[0].mxu0 %v395
    %v522 = vpop.f32.mrb[0].mxu0
    %v523 = vadd.f32 %v449, %v522
    %v524 = vpop.f32.mrb[0].mxu0
    %525 = vmatprep.mubr.f32.mxu0 0.0
    %526 = vmatmul.mubr.f32.gmra.mrb[0].mxu0 %v396
    %v527 = vpop.f32.mrb[0].mxu0
    %v528 = vadd.f32 %v449, %v527
    %v529 = vpop.f32.mrb[0].mxu0
    %530 = vmatprep.mubr.f32.mxu0 0.0
    %531 = vmatmul.mubr.f32.gmra.mrb[0].mxu0 %v397
    %v532 = vpop.f32.mrb[0].mxu0
    %v533 = vadd.f32 %v449, %v532
    %v534 = vpop.f32.mrb[0].mxu0
    %535 = vmatprep.mubr.f32.mxu0 0.0
    %536 = vmatmul.mubr.f32.gmra.mrb[0].mxu0 %v398
    %v537 = vpop.f32.mrb[0].mxu0
    %v538 = vadd.f32 %v449, %v537
    %v539 = vpop.f32.mrb[0].mxu0
    %540 = vmatprep.mubr.f32.mxu0 0.0
    %541 = vmatmul.mubr.f32.gmra.mrb[0].mxu0 %v399
    %v542 = vpop.f32.mrb[0].mxu0
    %v543 = vadd.f32 %v449, %v542
    %v544 = vpop.f32.mrb[0].mxu0
    %545 = vmatprep.mubr.f32.mxu0 0.0
    %546 = vmatmul.mubr.f32.gmra.mrb[0].mxu0 %v400
    %v547 = vpop.f32.mrb[0].mxu0
    %v548 = vadd.f32 %v449, %v547
    %v549 = vpop.f32.mrb[0].mxu0
    %550 = vmatprep.mubr.f32.mxu0 0.0
    %551 = vmatmul.mubr.f32.gmra.mrb[0].mxu0 %v401
    %v552 = vpop.f32.mrb[0].mxu0
    %v553 = vadd.f32 %v449, %v552
    %v554 = vpop.f32.mrb[0].mxu0
    %555 = vmatprep.mubr.f32.mxu0 0.0
    %556 = vmatmul.mubr.f32.gmra.mrb[0].mxu0 %v402
    %v557 = vpop.f32.mrb[0].mxu0
    %v558 = vadd.f32 %v449, %v557
    %v559 = vpop.f32.mrb[0].mxu0
    %560 = vmatprep.mubr.f32.mxu0 0.0
    %561 = vmatmul.mubr.f32.gmra.mrb[0].mxu0 %v403
    %v562 = vpop.f32.mrb[0].mxu0
    %v563 = vadd.f32 %v449, %v562
    %v564 = vpop.f32.mrb[0].mxu0
    %565 = vmatprep.mubr.f32.mxu0 0.0
    %566 = vmatmul.mubr.f32.gmra.mrb[0].mxu0 %v404
    %v567 = vpop.f32.mrb[0].mxu0
    %v568 = vadd.f32 %v449, %v567
    %v569 = vpop.f32.mrb[0].mxu0
    %570 = vmatprep.mubr.f32.mxu0 0.0
    %571 = vmatmul.mubr.f32.gmra.mrb[0].mxu0 %v405
    %v572 = vpop.f32.mrb[0].mxu0
    %v573 = vadd.f32 %v449, %v572
    %v574 = vpop.f32.mrb[0].mxu0
    %575 = vmatprep.mubr.f32.mxu0 0.0
    %576 = vmatmul.mubr.f32.gmra.mrb[0].mxu0 %v406
    %v577 = vpop.f32.mrb[0].mxu0
    %v578 = vadd.f32 %v449, %v577
    %v579 = vpop.f32.mrb[0].mxu0
    %580 = vmatprep.mubr.f32.mxu0 0.0
    %581 = vmatmul.mubr.f32.gmra.mrb[0].mxu0 %v407
    %v582 = vpop.f32.mrb[0].mxu0
    %v583 = vadd.f32 %v449, %v582
    %v584 = vpop.f32.mrb[0].mxu0
    %585 = vmatprep.mubr.f32.mxu0 0.0
    %586 = vmatmul.mubr.f32.gmra.mrb[0].mxu0 %v408
    %v587 = vpop.f32.mrb[0].mxu0
    %v588 = vadd.f32 %v449, %v587
    %v589 = vpop.f32.mrb[0].mxu0
    %590 = vmatprep.mubr.f32.mxu0 0.0
    %591 = vmatmul.mubr.f32.gmra.mrb[0].mxu0 %v409
    %v592 = vpop.f32.mrb[0].mxu0
    %v593 = vadd.f32 %v449, %v592
    %v594 = vpop.f32.mrb[0].mxu0
    %595 = vmatprep.mubr.f32.mxu0 0.0
    %596 = vmatmul.mubr.f32.gmra.mrb[0].mxu0 %v410
    %v597 = vpop.f32.mrb[0].mxu0
    %v598 = vadd.f32 %v449, %v597
    %v599 = vpop.f32.mrb[0].mxu0
    %600 = vmatprep.mubr.f32.mxu0 0.0
    %601 = vmatmul.mubr.f32.gmra.mrb[0].mxu0 %v411
    %v602 = vpop.f32.mrb[0].mxu0
    %v603 = vadd.f32 %v449, %v602
    %v604 = vpop.f32.mrb[0].mxu0
    %605 = vmatprep.mubr.f32.mxu0 0.0
    %606 = vmatmul.mubr.f32.gmra.mrb[0].mxu0 %v412
    %v607 = vpop.f32.mrb[0].mxu0
    %v608 = vadd.f32 %v449, %v607
    %v609 = vpop.f32.mrb[0].mxu0
    %610 = vmatprep.mubr.f32.mxu0 0.0
    %611 = vmatmul.mubr.f32.gmra.mrb[0].mxu0 %v413
    %v612 = vpop.f32.mrb[0].mxu0
    %v613 = vadd.f32 %v449, %v612
    %v614 = vpop.f32.mrb[0].mxu0
    %615 = vmatprep.mubr.f32.mxu0 0.0
    %616 = vmatmul.mubr.f32.gmra.mrb[0].mxu0 %v414
    %v617 = vpop.f32.mrb[0].mxu0
    %v618 = vadd.f32 %v449, %v617
    %v619 = vpop.f32.mrb[0].mxu0
    %620 = vmatprep.mubr.f32.mxu0 0.0
    %621 = vmatmul.mubr.f32.gmra.mrb[0].mxu0 %v415
    %v622 = vpop.f32.mrb[0].mxu0
    %v623 = vadd.f32 %v449, %v622
    %v624 = vpop.f32.mrb[0].mxu0
    %625 = vmatprep.mubr.f32.mxu0 0.0
    %626 = vmatmul.mubr.f32.gmra.mrb[0].mxu0 %v416
    %v627 = vpop.f32.mrb[0].mxu0
    %v628 = vadd.f32 %v449, %v627
    %v629 = vpop.f32.mrb[0].mxu0
    %630 = vmatprep.mubr.f32.mxu0 0.0
    %631 = vmatmul.mubr.f32.gmra.mrb[0].mxu0 %v417
    %v632 = vpop.f32.mrb[0].mxu0
    %v633 = vadd.f32 %v449, %v632
    %v634 = vpop.f32.mrb[0].mxu0
    %635 = vmatprep.mubr.f32.mxu0 0.0
    %636 = vmatmul.mubr.f32.gmra.mrb[0].mxu0 %v418
    %v637 = vpop.f32.mrb[0].mxu0
    %v638 = vadd.f32 %v449, %v637
    %v639 = vpop.f32.mrb[0].mxu0
    %640 = vmatprep.mubr.f32.mxu0 0.0
    %641 = vmatmul.mubr.f32.gmra.mrb[0].mxu0 %v419
    %v642 = vpop.f32.mrb[0].mxu0
    %v643 = vadd.f32 %v449, %v642
    %v644 = vpop.f32.mrb[0].mxu0
    %645 = vmatprep.mubr.f32.mxu0 0.0
    %646 = vmatmul.mubr.f32.gmra.mrb[0].mxu0 %v420
    %v647 = vpop.f32.mrb[0].mxu0
    %v648 = vadd.f32 %v449, %v647
    %v649 = vpop.f32.mrb[0].mxu0
    %650 = vmatprep.mubr.f32.mxu0 0.0
    %651 = vmatmul.mubr.f32.gmra.mrb[0].mxu0 %v421
    %v652 = vpop.f32.mrb[0].mxu0
    %v653 = vadd.f32 %v449, %v652
    %v654 = vpop.f32.mrb[0].mxu0
    %655 = vmatprep.mubr.f32.mxu0 0.0
    %656 = vmatmul.mubr.f32.gmra.mrb[0].mxu0 %v422
    %v657 = vpop.f32.mrb[0].mxu0
    %v658 = vadd.f32 %v449, %v657
    %v659 = vpop.f32.mrb[0].mxu0
    %660 = vmatprep.mubr.f32.mxu0 0.0
    %661 = vmatmul.mubr.f32.gmra.mrb[0].mxu0 %v423
    %v662 = vpop.f32.mrb[0].mxu0
    %v663 = vadd.f32 %v449, %v662
    %v664 = vpop.f32.mrb[0].mxu0
    %665 = vmatprep.mubr.f32.mxu0 0.0
    %666 = vmatmul.mubr.f32.gmra.mrb[0].mxu0 %v424
    %v667 = vpop.f32.mrb[0].mxu0
    %v668 = vadd.f32 %v449, %v667
    %v669 = vpop.f32.mrb[0].mxu0
    %670 = vmatprep.mubr.f32.mxu0 0.0
    %671 = vmatmul.mubr.f32.gmra.mrb[0].mxu0 %v425
    %v672 = vpop.f32.mrb[0].mxu0
    %v673 = vadd.f32 %v449, %v672
    %v674 = vpop.f32.mrb[0].mxu0
    %675 = vdwg.mxu0
    %v676 = vmax.f32 %v518, 0.0
    %v677 = vmax.f32 %v523, 0.0
    %v678 = vmax.f32 %v528, 0.0
    %v679 = vmax.f32 %v533, 0.0
    %v680 = vmax.f32 %v538, 0.0
    %v681 = vmax.f32 %v543, 0.0
    %v682 = vmax.f32 %v548, 0.0
    %v683 = vmax.f32 %v553, 0.0
    %v684 = vmax.f32 %v558, 0.0
    %v685 = vmax.f32 %v563, 0.0
    %v686 = vmax.f32 %v568, 0.0
    %v687 = vmax.f32 %v573, 0.0
    %v688 = vmax.f32 %v578, 0.0
    %v689 = vmax.f32 %v583, 0.0
    %v690 = vmax.f32 %v588, 0.0
    %v691 = vmax.f32 %v593, 0.0
    %v692 = vmax.f32 %v598, 0.0
    %v693 = vmax.f32 %v603, 0.0
    %v694 = vmax.f32 %v608, 0.0
    %v695 = vmax.f32 %v613, 0.0
    %v696 = vmax.f32 %v618, 0.0
    %v697 = vmax.f32 %v623, 0.0
    %v698 = vmax.f32 %v628, 0.0
    %v699 = vmax.f32 %v633, 0.0
    %v700 = vmax.f32 %v638, 0.0
    %v701 = vmax.f32 %v643, 0.0
    %v702 = vmax.f32 %v648, 0.0
    %v703 = vmax.f32 %v653, 0.0
    %v704 = vmax.f32 %v658, 0.0
    %v705 = vmax.f32 %v663, 0.0
    %v706 = vmax.f32 %v668, 0.0
    %v707 = vmax.f32 %v673, 0.0
    %s708 = scalar_lea.vmem [#allocation2], 256
    %v709 = vld [vmem:[%s708] sm:$0xff]
    %v710 = vld [vmem:[%s708 + $0x8] sm:$0xff]
    %v711 = vld [vmem:[%s708 + $0x10] sm:$0xff]
    %v712 = vld [vmem:[%s708 + $0x18] sm:$0xff]
    %v713 = vld [vmem:[%s708 + $0x20] sm:$0xff]
    %v714 = vld [vmem:[%s708 + $0x28] sm:$0xff]
    %v715 = vld [vmem:[%s708 + $0x30] sm:$0xff]
    %v716 = vld [vmem:[%s708 + $0x38] sm:$0xff]
    %v717 = vld [vmem:[%s708 + $0x40] sm:$0xff]
    %v718 = vld [vmem:[%s708 + $0x48] sm:$0xff]
    %v719 = vld [vmem:[%s708 + $0x50] sm:$0xff]
    %v720 = vld [vmem:[%s708 + $0x58] sm:$0xff]
    %v721 = vld [vmem:[%s708 + $0x60] sm:$0xff]
    %v722 = vld [vmem:[%s708 + $0x68] sm:$0xff]
    %v723 = vld [vmem:[%s708 + $0x70] sm:$0xff]
    %v724 = vld [vmem:[%s708 + $0x78] sm:$0xff]
    %s725 = scalar_lea.vmem %s2, 2
    %v726 = vld [vmem:[%s725] sm:$0x1]
    %v728 = vlaneseq
    %v729 = vshrl.u32 %v728, 7
    %v730 = vsub.s32 0, %v729
    %v731 = vrot.slane %v726, %v730
    %733 = vmatprep.subr.mxu0 0.0
    %734 = vmatpush1.msra.mxu0 %v709
    %735 = vmatprep.subr.mxu0 0.0
    %736 = vmatpush1.msra.mxu0 %v710
    %737 = vmatprep.subr.mxu0 0.0
    %738 = vmatpush1.msra.mxu0 %v711
    %739 = vmatprep.subr.mxu0 0.0
    %740 = vmatpush1.msra.mxu0 %v712
    %741 = vmatprep.subr.mxu0 0.0
    %742 = vmatpush1.msra.mxu0 %v713
    %743 = vmatprep.subr.mxu0 0.0
    %744 = vmatpush1.msra.mxu0 %v714
    %745 = vmatprep.subr.mxu0 0.0
    %746 = vmatpush1.msra.mxu0 %v715
    %747 = vmatprep.subr.mxu0 0.0
    %748 = vmatpush1.msra.mxu0 %v716
    %749 = vmatprep.subr.mxu0 0.0
    %750 = vmatpush1.msra.mxu0 %v717
    %751 = vmatprep.subr.mxu0 0.0
    %752 = vmatpush1.msra.mxu0 %v718
    %753 = vmatprep.subr.mxu0 0.0
    %754 = vmatpush1.msra.mxu0 %v719
    %755 = vmatprep.subr.mxu0 0.0
    %756 = vmatpush1.msra.mxu0 %v720
    %757 = vmatprep.subr.mxu0 0.0
    %758 = vmatpush1.msra.mxu0 %v721
    %759 = vmatprep.subr.mxu0 0.0
    %760 = vmatpush1.msra.mxu0 %v722
    %761 = vmatprep.subr.mxu0 0.0
    %762 = vmatpush1.msra.mxu0 %v723
    %763 = vmatprep.subr.mxu0 0.0
    %764 = vmatpush1.msra.mxu0 %v724
    %765 = vmatprep.subr.mxu0 0.0
    %766 = vmatpush1.msra.mxu0 0.0
    %767 = vmatprep.subr.mxu0 0.0
    %768 = vmatpush1.msra.mxu0 0.0
    %769 = vmatprep.subr.mxu0 0.0
    %770 = vmatpush1.msra.mxu0 0.0
    %771 = vmatprep.subr.mxu0 0.0
    %772 = vmatpush1.msra.mxu0 0.0
    %773 = vmatprep.subr.mxu0 0.0
    %774 = vmatpush1.msra.mxu0 0.0
    %775 = vmatprep.subr.mxu0 0.0
    %776 = vmatpush1.msra.mxu0 0.0
    %777 = vmatprep.subr.mxu0 0.0
    %778 = vmatpush1.msra.mxu0 0.0
    %779 = vmatprep.subr.mxu0 0.0
    %780 = vmatpush1.msra.mxu0 0.0
    %781 = vmatprep.subr.mxu0 0.0
    %782 = vmatpush1.msra.mxu0 0.0
    %783 = vmatprep.subr.mxu0 0.0
    %784 = vmatpush1.msra.mxu0 0.0
    %785 = vmatprep.subr.mxu0 0.0
    %786 = vmatpush1.msra.mxu0 0.0
    %787 = vmatprep.subr.mxu0 0.0
    %788 = vmatpush1.msra.mxu0 0.0
    %789 = vmatprep.subr.mxu0 0.0
    %790 = vmatpush1.msra.mxu0 0.0
    %791 = vmatprep.subr.mxu0 0.0
    %792 = vmatpush1.msra.mxu0 0.0
    %793 = vmatprep.subr.mxu0 0.0
    %794 = vmatpush1.msra.mxu0 0.0
    %795 = vmatprep.subr.mxu0 0.0
    %796 = vmatpush1.msra.mxu0 0.0
    %797 = vmatprep.mubr.f32.mxu0 0.0
    %798 = vmatmul.mubr.f32.gmra.mrb[0].mxu0 %v676
    %v799 = vpop.f32.mrb[0].mxu0
    %v800 = vadd.f32 %v731, %v799
    %v801 = vpop.f32.mrb[0].mxu0
    %802 = vmatprep.mubr.f32.mxu0 0.0
    %803 = vmatmul.mubr.f32.gmra.mrb[0].mxu0 %v677
    %v804 = vpop.f32.mrb[0].mxu0
    %v805 = vadd.f32 %v731, %v804
    %v806 = vpop.f32.mrb[0].mxu0
    %807 = vmatprep.mubr.f32.mxu0 0.0
    %808 = vmatmul.mubr.f32.gmra.mrb[0].mxu0 %v678
    %v809 = vpop.f32.mrb[0].mxu0
    %v810 = vadd.f32 %v731, %v809
    %v811 = vpop.f32.mrb[0].mxu0
    %812 = vmatprep.mubr.f32.mxu0 0.0
    %813 = vmatmul.mubr.f32.gmra.mrb[0].mxu0 %v679
    %v814 = vpop.f32.mrb[0].mxu0
    %v815 = vadd.f32 %v731, %v814
    %v816 = vpop.f32.mrb[0].mxu0
    %817 = vmatprep.mubr.f32.mxu0 0.0
    %818 = vmatmul.mubr.f32.gmra.mrb[0].mxu0 %v680
    %v819 = vpop.f32.mrb[0].mxu0
    %v820 = vadd.f32 %v731, %v819
    %v821 = vpop.f32.mrb[0].mxu0
    %822 = vmatprep.mubr.f32.mxu0 0.0
    %823 = vmatmul.mubr.f32.gmra.mrb[0].mxu0 %v681
    %v824 = vpop.f32.mrb[0].mxu0
    %v825 = vadd.f32 %v731, %v824
    %v826 = vpop.f32.mrb[0].mxu0
    %827 = vmatprep.mubr.f32.mxu0 0.0
    %828 = vmatmul.mubr.f32.gmra.mrb[0].mxu0 %v682
    %v829 = vpop.f32.mrb[0].mxu0
    %v830 = vadd.f32 %v731, %v829
    %v831 = vpop.f32.mrb[0].mxu0
    %832 = vmatprep.mubr.f32.mxu0 0.0
    %833 = vmatmul.mubr.f32.gmra.mrb[0].mxu0 %v683
    %v834 = vpop.f32.mrb[0].mxu0
    %v835 = vadd.f32 %v731, %v834
    %v836 = vpop.f32.mrb[0].mxu0
    %837 = vmatprep.mubr.f32.mxu0 0.0
    %838 = vmatmul.mubr.f32.gmra.mrb[0].mxu0 %v684
    %v839 = vpop.f32.mrb[0].mxu0
    %v840 = vadd.f32 %v731, %v839
    %v841 = vpop.f32.mrb[0].mxu0
    %842 = vmatprep.mubr.f32.mxu0 0.0
    %843 = vmatmul.mubr.f32.gmra.mrb[0].mxu0 %v685
    %v844 = vpop.f32.mrb[0].mxu0
    %v845 = vadd.f32 %v731, %v844
    %v846 = vpop.f32.mrb[0].mxu0
    %847 = vmatprep.mubr.f32.mxu0 0.0
    %848 = vmatmul.mubr.f32.gmra.mrb[0].mxu0 %v686
    %v849 = vpop.f32.mrb[0].mxu0
    %v850 = vadd.f32 %v731, %v849
    %v851 = vpop.f32.mrb[0].mxu0
    %852 = vmatprep.mubr.f32.mxu0 0.0
    %853 = vmatmul.mubr.f32.gmra.mrb[0].mxu0 %v687
    %v854 = vpop.f32.mrb[0].mxu0
    %v855 = vadd.f32 %v731, %v854
    %v856 = vpop.f32.mrb[0].mxu0
    %857 = vmatprep.mubr.f32.mxu0 0.0
    %858 = vmatmul.mubr.f32.gmra.mrb[0].mxu0 %v688
    %v859 = vpop.f32.mrb[0].mxu0
    %v860 = vadd.f32 %v731, %v859
    %v861 = vpop.f32.mrb[0].mxu0
    %862 = vmatprep.mubr.f32.mxu0 0.0
    %863 = vmatmul.mubr.f32.gmra.mrb[0].mxu0 %v689
    %v864 = vpop.f32.mrb[0].mxu0
    %v865 = vadd.f32 %v731, %v864
    %v866 = vpop.f32.mrb[0].mxu0
    %867 = vmatprep.mubr.f32.mxu0 0.0
    %868 = vmatmul.mubr.f32.gmra.mrb[0].mxu0 %v690
    %v869 = vpop.f32.mrb[0].mxu0
    %v870 = vadd.f32 %v731, %v869
    %v871 = vpop.f32.mrb[0].mxu0
    %872 = vmatprep.mubr.f32.mxu0 0.0
    %873 = vmatmul.mubr.f32.gmra.mrb[0].mxu0 %v691
    %v874 = vpop.f32.mrb[0].mxu0
    %v875 = vadd.f32 %v731, %v874
    %v876 = vpop.f32.mrb[0].mxu0
    %877 = vmatprep.mubr.f32.mxu0 0.0
    %878 = vmatmul.mubr.f32.gmra.mrb[0].mxu0 %v692
    %v879 = vpop.f32.mrb[0].mxu0
    %v880 = vadd.f32 %v731, %v879
    %v881 = vpop.f32.mrb[0].mxu0
    %882 = vmatprep.mubr.f32.mxu0 0.0
    %883 = vmatmul.mubr.f32.gmra.mrb[0].mxu0 %v693
    %v884 = vpop.f32.mrb[0].mxu0
    %v885 = vadd.f32 %v731, %v884
    %v886 = vpop.f32.mrb[0].mxu0
    %887 = vmatprep.mubr.f32.mxu0 0.0
    %888 = vmatmul.mubr.f32.gmra.mrb[0].mxu0 %v694
    %v889 = vpop.f32.mrb[0].mxu0
    %v890 = vadd.f32 %v731, %v889
    %v891 = vpop.f32.mrb[0].mxu0
    %892 = vmatprep.mubr.f32.mxu0 0.0
    %893 = vmatmul.mubr.f32.gmra.mrb[0].mxu0 %v695
    %v894 = vpop.f32.mrb[0].mxu0
    %v895 = vadd.f32 %v731, %v894
    %v896 = vpop.f32.mrb[0].mxu0
    %897 = vmatprep.mubr.f32.mxu0 0.0
    %898 = vmatmul.mubr.f32.gmra.mrb[0].mxu0 %v696
    %v899 = vpop.f32.mrb[0].mxu0
    %v900 = vadd.f32 %v731, %v899
    %v901 = vpop.f32.mrb[0].mxu0
    %902 = vmatprep.mubr.f32.mxu0 0.0
    %903 = vmatmul.mubr.f32.gmra.mrb[0].mxu0 %v697
    %v904 = vpop.f32.mrb[0].mxu0
    %v905 = vadd.f32 %v731, %v904
    %v906 = vpop.f32.mrb[0].mxu0
    %907 = vmatprep.mubr.f32.mxu0 0.0
    %908 = vmatmul.mubr.f32.gmra.mrb[0].mxu0 %v698
    %v909 = vpop.f32.mrb[0].mxu0
    %v910 = vadd.f32 %v731, %v909
    %v911 = vpop.f32.mrb[0].mxu0
    %912 = vmatprep.mubr.f32.mxu0 0.0
    %913 = vmatmul.mubr.f32.gmra.mrb[0].mxu0 %v699
    %v914 = vpop.f32.mrb[0].mxu0
    %v915 = vadd.f32 %v731, %v914
    %v916 = vpop.f32.mrb[0].mxu0
    %917 = vmatprep.mubr.f32.mxu0 0.0
    %918 = vmatmul.mubr.f32.gmra.mrb[0].mxu0 %v700
    %v919 = vpop.f32.mrb[0].mxu0
    %v920 = vadd.f32 %v731, %v919
    %v921 = vpop.f32.mrb[0].mxu0
    %922 = vmatprep.mubr.f32.mxu0 0.0
    %923 = vmatmul.mubr.f32.gmra.mrb[0].mxu0 %v701
    %v924 = vpop.f32.mrb[0].mxu0
    %v925 = vadd.f32 %v731, %v924
    %v926 = vpop.f32.mrb[0].mxu0
    %927 = vmatprep.mubr.f32.mxu0 0.0
    %928 = vmatmul.mubr.f32.gmra.mrb[0].mxu0 %v702
    %v929 = vpop.f32.mrb[0].mxu0
    %v930 = vadd.f32 %v731, %v929
    %v931 = vpop.f32.mrb[0].mxu0
    %932 = vmatprep.mubr.f32.mxu0 0.0
    %933 = vmatmul.mubr.f32.gmra.mrb[0].mxu0 %v703
    %v934 = vpop.f32.mrb[0].mxu0
    %v935 = vadd.f32 %v731, %v934
    %v936 = vpop.f32.mrb[0].mxu0
    %937 = vmatprep.mubr.f32.mxu0 0.0
    %938 = vmatmul.mubr.f32.gmra.mrb[0].mxu0 %v704
    %v939 = vpop.f32.mrb[0].mxu0
    %v940 = vadd.f32 %v731, %v939
    %v941 = vpop.f32.mrb[0].mxu0
    %942 = vmatprep.mubr.f32.mxu0 0.0
    %943 = vmatmul.mubr.f32.gmra.mrb[0].mxu0 %v705
    %v944 = vpop.f32.mrb[0].mxu0
    %v945 = vadd.f32 %v731, %v944
    %v946 = vpop.f32.mrb[0].mxu0
    %947 = vmatprep.mubr.f32.mxu0 0.0
    %948 = vmatmul.mubr.f32.gmra.mrb[0].mxu0 %v706
    %v949 = vpop.f32.mrb[0].mxu0
    %v950 = vadd.f32 %v731, %v949
    %v951 = vpop.f32.mrb[0].mxu0
    %952 = vmatprep.mubr.f32.mxu0 0.0
    %953 = vmatmul.mubr.f32.gmra.mrb[0].mxu0 %v707
    %v954 = vpop.f32.mrb[0].mxu0
    %v955 = vadd.f32 %v731, %v954
    %v956 = vpop.f32.mrb[0].mxu0
    %957 = vdwg.mxu0
    %958 = vst [vmem:[%s3] sm:$0xff] %v800
    %959 = vst [vmem:[%s3 + $0x8] sm:$0xff] %v805
    %960 = vst [vmem:[%s3 + $0x10] sm:$0xff] %v810
    %961 = vst [vmem:[%s3 + $0x18] sm:$0xff] %v815
    %962 = vst [vmem:[%s3 + $0x20] sm:$0xff] %v820
    %963 = vst [vmem:[%s3 + $0x28] sm:$0xff] %v825
    %964 = vst [vmem:[%s3 + $0x30] sm:$0xff] %v830
    %965 = vst [vmem:[%s3 + $0x38] sm:$0xff] %v835
    %966 = vst [vmem:[%s3 + $0x40] sm:$0xff] %v840
    %967 = vst [vmem:[%s3 + $0x48] sm:$0xff] %v845
    %968 = vst [vmem:[%s3 + $0x50] sm:$0xff] %v850
    %969 = vst [vmem:[%s3 + $0x58] sm:$0xff] %v855
    %970 = vst [vmem:[%s3 + $0x60] sm:$0xff] %v860
    %971 = vst [vmem:[%s3 + $0x68] sm:$0xff] %v865
    %972 = vst [vmem:[%s3 + $0x70] sm:$0xff] %v870
    %973 = vst [vmem:[%s3 + $0x78] sm:$0xff] %v875
    %974 = vst [vmem:[%s3 + $0x80] sm:$0xff] %v880
    %975 = vst [vmem:[%s3 + $0x88] sm:$0xff] %v885
    %976 = vst [vmem:[%s3 + $0x90] sm:$0xff] %v890
    %977 = vst [vmem:[%s3 + $0x98] sm:$0xff] %v895
    %978 = vst [vmem:[%s3 + $0xa0] sm:$0xff] %v900
    %979 = vst [vmem:[%s3 + $0xa8] sm:$0xff] %v905
    %980 = vst [vmem:[%s3 + $0xb0] sm:$0xff] %v910
    %981 = vst [vmem:[%s3 + $0xb8] sm:$0xff] %v915
    %982 = vst [vmem:[%s3 + $0xc0] sm:$0xff] %v920
    %983 = vst [vmem:[%s3 + $0xc8] sm:$0xff] %v925
    %984 = vst [vmem:[%s3 + $0xd0] sm:$0xff] %v930
    %985 = vst [vmem:[%s3 + $0xd8] sm:$0xff] %v935
    %986 = vst [vmem:[%s3 + $0xe0] sm:$0xff] %v940
    %987 = vst [vmem:[%s3 + $0xe8] sm:$0xff] %v945
    %988 = vst [vmem:[%s3 + $0xf0] sm:$0xff] %v950
    %989 = vst [vmem:[%s3 + $0xf8] sm:$0xff] %v955
    // Predicated region
    $region18: #{dqn_forward.1} parent=1 // pred_check
      _
    $region19: #{dqn_forward.1} parent=1 // pred_check_branch
      %991 = sbr.rel (0) target = $region21
    $region20: #{dqn_forward.1} parent=1 // pred_region
      _
    $region21: #{dqn_forward.1} parent=1 // pred_fallthru
      _
    // Predicated region
    $region22: #{dqn_forward.1} parent=1 // pred_check
      _
    $region23: #{dqn_forward.1} parent=1 // pred_check_branch
      %993 = sbr.rel (0) target = $region25
    $region24: #{dqn_forward.1} parent=1 // pred_region
      _
    $region25: #{dqn_forward.1} parent=1 // pred_fallthru
      _
    %994 = vsyncpa [#allocation3], 1

</llo_original>
